<compile_context>
chip_gen: v5e
topology: v5e:2x2
jax: 0.10.0
libtpu: 0.0.40
codegen_flags: <defaults>
</compile_context>

<pallas_src>
import functools

import jax
import jax.numpy as jnp
from jax.experimental import pallas as pl
from jax.experimental.pallas import tpu as pltpu


def _round_up(x, m):
    return (x + m - 1) // m * m


def _pick_tk(k_pad, cap):
    """Largest multiple-of-512 divisor of k_pad that is <= cap."""
    best = 512
    t = 512
    while t <= min(cap, k_pad):
        if k_pad % t == 0:
            best = t
        t += 512
    return best


def _pick_tn(c_pad):
    if c_pad <= 512:
        return c_pad
    for cand in (512, 384, 256, 128):
        if c_pad % cand == 0:
            return cand
    return 128


# ---------------------------------------------------------------------------
# Kernels
# ---------------------------------------------------------------------------

def clip_head_fused_kernel(x_ref, t_ref, wv_ref, wt_ref, b_ref, out_ref):
    """logits_tile = x @ Wv' + LN0(t) @ Wt' + b'   (fc folded into weights).

    Grid = (M_tiles, N_tiles, K_tiles); K is the flattened-image feature axis.
    out_ref's block index is constant along K, so it is the VMEM-resident
    accumulator (f32).  Text branch + bias are the k==0 prologue.
    """
    k = pl.program_id(2)

    @pl.when(k == 0)
    def _():
        t = t_ref[...]                                   # f32
        mean = jnp.mean(t, axis=-1, keepdims=True)
        var = jnp.mean((t - mean) ** 2, axis=-1, keepdims=True)
        t_norm = (t - mean) * jax.lax.rsqrt(var + 1e-5)
        out_ref[...] = b_ref[...] + jnp.dot(
            t_norm.astype(jnp.bfloat16), wt_ref[...],
            preferred_element_type=jnp.float32)

    out_ref[...] += jnp.dot(x_ref[...], wv_ref[...],
                            preferred_element_type=jnp.float32)


def clip_head_unfused_kernel(x_ref, t_ref, wv_ref, wt_ref, bproj_ref,
                             wfc_ref, fcb_ref, out_ref, feat_ref):
    """Two-stage head for large class counts:
         feat = x @ Wv + LN0(t) @ (gamma*Wt) + beta@Wt     [tm, P_pad]
         out  = feat @ Wfc + fc_b                          [tm, C_pad]
    Grid = (M_tiles, K_tiles).
    """
    k = pl.program_id(1)

    @pl.when(k == 0)
    def _():
        t = t_ref[...]
        mean = jnp.mean(t, axis=-1, keepdims=True)
        var = jnp.mean((t - mean) ** 2, axis=-1, keepdims=True)
        t_norm = (t - mean) * jax.lax.rsqrt(var + 1e-5)
        feat_ref[...] = bproj_ref[...] + jnp.dot(
            t_norm.astype(jnp.bfloat16), wt_ref[...],
            preferred_element_type=jnp.float32)

    feat_ref[...] += jnp.dot(x_ref[...], wv_ref[...],
                             preferred_element_type=jnp.float32)

    @pl.when(k == pl.num_programs(1) - 1)
    def _():
        out_ref[...] = (jnp.dot(feat_ref[...].astype(jnp.bfloat16), wfc_ref[...],
                                preferred_element_type=jnp.float32)
                        + fcb_ref[...]).astype(out_ref.dtype)


# ---------------------------------------------------------------------------
# Parameter preparation (one-time; outside jit)
# ---------------------------------------------------------------------------

def prepare_params(params, lane=128, k_align=512):
    """One-time padding / bf16 cast; algebraic head fusion when it saves bytes."""
    vp = params["visual_proj"].astype(jnp.float32)          # [Din, P]
    tp = params["text_proj"].astype(jnp.float32)            # [W,   P]
    gamma = params["ln_gamma"].astype(jnp.float32)           # [W]
    beta = params["ln_beta"].astype(jnp.float32)             # [W]
    wfc = params["fc_w"].T.astype(jnp.float32)                # [P, C]
    fcb = params["fc_b"].astype(jnp.float32)                  # [C]

    din, p = vp.shape
    c = wfc.shape[1]
    k_pad = _round_up(din, k_align)       # weight padded along K ONCE, here.
    c_pad = _round_up(c, lane)
    p_pad = _round_up(p, lane)

    fused = c_pad <= p_pad                # fuse only when it does not inflate
                                          # the streamed weight / FLOPs.
    prep = {
        "token_embed": params["token_embed"].astype(jnp.float32),
        "num_categories": c,
        "fused": fused,
    }

    if fused:
        wv = vp @ wfc                                         # [Din, C]
        wt = (gamma[:, None] * tp) @ wfc                      # [W,   C]
        bias = beta @ tp @ wfc + fcb                          # [C]
        prep["wv"] = jnp.pad(wv, ((0, k_pad - din), (0, c_pad - c))).astype(jnp.bfloat16)
        prep["wt"] = jnp.pad(wt, ((0, 0), (0, c_pad - c))).astype(jnp.bfloat16)
        prep["bias"] = jnp.pad(bias, ((0, c_pad - c),)).reshape(1, c_pad)
    else:
        prep["wv"] = jnp.pad(vp, ((0, k_pad - din), (0, p_pad - p))).astype(jnp.bfloat16)
        prep["wt"] = jnp.pad(gamma[:, None] * tp, ((0, 0), (0, p_pad - p))).astype(jnp.bfloat16)
        prep["beta_proj"] = jnp.pad(beta @ tp, ((0, p_pad - p),)).reshape(1, p_pad)
        prep["wfc"] = jnp.pad(wfc, ((0, p_pad - p), (0, c_pad - c))).astype(jnp.bfloat16)
        prep["fcb"] = jnp.pad(fcb, ((0, c_pad - c),)).reshape(1, c_pad)
    return prep


# ---------------------------------------------------------------------------
# Forward wrappers
# ---------------------------------------------------------------------------

def _pool_text(token_embed, captions):
    # TODO(synk): frozen CLIP text transformer is not implemented; last-token
    # embedding gather stands in for the EOT-pooled transformer output.
    return token_embed[captions[:, -1]]


@functools.partial(jax.jit, static_argnums=(6,))
def _forward_fused(images, captions, token_embed, wv, wt, bias, num_categories):
    B = images.shape[0]
    x = images.reshape(B, -1).astype(jnp.bfloat16)             # [B, Din]
    din = x.shape[1]
    width = token_embed.shape[1]
    k_pad, c_pad = wv.shape                                     # pre-padded weight

    tm = 256 if B >= 256 else min(128, _round_up(B, 8))
    b_pad = _round_up(B, tm)
    tn = _pick_tn(c_pad)
    tk = _pick_tk(k_pad, 4096 if c_pad <= 256 else 2048)

    # Only the small per-call activations get padded inside the jit.
    x = jnp.pad(x, ((0, b_pad - B), (0, k_pad - din)))
    pooled = jnp.pad(_pool_text(token_embed, captions), ((0, b_pad - B), (0, 0)))

    grid = (b_pad // tm, c_pad // tn, k_pad // tk)

    cost = pl.CostEstimate(
        flops=2 * b_pad * k_pad * c_pad + 2 * b_pad * width * c_pad,
        transcendentals=b_pad * (c_pad // tn),
        bytes_accessed=(b_pad * k_pad * 2
                        + (b_pad // tm) * k_pad * c_pad * 2
                        + b_pad * c_pad * 4
                        + b_pad * width * 4))

    out = pl.pallas_call(
        clip_head_fused_kernel,
        out_shape=jax.ShapeDtypeStruct((b_pad, c_pad), jnp.float32),
        grid_spec=pltpu.PrefetchScalarGridSpec(
            num_scalar_prefetch=0,
            grid=grid,
            in_specs=[
                pl.BlockSpec((tm, tk), lambda i, j, k: (i, k)),      # x tile
                pl.BlockSpec((tm, width), lambda i, j, k: (i, 0)),   # pooled text
                pl.BlockSpec((tk, tn), lambda i, j, k: (k, j)),      # Wv'
                pl.BlockSpec((width, tn), lambda i, j, k: (0, j)),   # Wt'
                pl.BlockSpec((1, tn), lambda i, j, k: (0, j)),       # bias'
            ],
            out_specs=pl.BlockSpec((tm, tn), lambda i, j, k: (i, j)),
        ),
        compiler_params=pltpu.CompilerParams(
            dimension_semantics=("parallel", "parallel", "arbitrary"),
            vmem_limit_bytes=32 * 1024 * 1024,
        ),
        cost_estimate=cost,
    )(x, pooled, wv, wt, bias)

    return out[:B, :num_categories]


@functools.partial(jax.jit, static_argnums=(8,))
def _forward_unfused(images, captions, token_embed, wv, wt, beta_proj, wfc, fcb,
                     num_categories):
    B = images.shape[0]
    x = images.reshape(B, -1).astype(jnp.bfloat16)
    din = x.shape[1]
    width = token_embed.shape[1]
    k_pad, p_pad = wv.shape
    c_pad = wfc.shape[1]

    tm = 256 if B >= 256 else min(128, _round_up(B, 8))
    b_pad = _round_up(B, tm)
    tk = _pick_tk(k_pad, 2048)

    x = jnp.pad(x, ((0, b_pad - B), (0, k_pad - din)))
    pooled = jnp.pad(_pool_text(token_embed, captions), ((0, b_pad - B), (0, 0)))

    grid = (b_pad // tm, k_pad // tk)

    cost = pl.CostEstimate(
        flops=(2 * b_pad * k_pad * p_pad + 2 * b_pad * width * p_pad
               + 2 * b_pad * p_pad * c_pad),
        transcendentals=b_pad,
        bytes_accessed=(b_pad * k_pad * 2
                        + (b_pad // tm) * k_pad * p_pad * 2
                        + p_pad * c_pad * 2
                        + b_pad * c_pad * 4
                        + b_pad * width * 4))

    out = pl.pallas_call(
        clip_head_unfused_kernel,
        out_shape=jax.ShapeDtypeStruct((b_pad, c_pad), jnp.float32),
        grid_spec=pltpu.PrefetchScalarGridSpec(
            num_scalar_prefetch=0,
            grid=grid,
            in_specs=[
                pl.BlockSpec((tm, tk), lambda i, k: (i, k)),         # x tile
                pl.BlockSpec((tm, width), lambda i, k: (i, 0)),      # pooled text
                pl.BlockSpec((tk, p_pad), lambda i, k: (k, 0)),      # visual_proj
                pl.BlockSpec((width, p_pad), lambda i, k: (0, 0)),   # gamma*text_proj
                pl.BlockSpec((1, p_pad), lambda i, k: (0, 0)),       # beta@text_proj
                pl.BlockSpec((p_pad, c_pad), lambda i, k: (0, 0)),   # fc weight
                pl.BlockSpec((1, c_pad), lambda i, k: (0, 0)),       # fc bias
            ],
            out_specs=pl.BlockSpec((tm, c_pad), lambda i, k: (i, 0)),
            scratch_shapes=[pltpu.VMEM((tm, p_pad), jnp.float32)],
        ),
        compiler_params=pltpu.CompilerParams(
            dimension_semantics=("parallel", "arbitrary"),
            vmem_limit_bytes=32 * 1024 * 1024,
        ),
        cost_estimate=cost,
    )(x, pooled, wv, wt, beta_proj, wfc, fcb)

    return out[:B, :num_categories]


def clip_with_classifier(images, captions, prep):
    """Forward pass matching CLIPWithClassifier.forward semantics."""
    if prep["fused"]:
        return _forward_fused(images, captions, prep["token_embed"], prep["wv"],
                              prep["wt"], prep["bias"], prep["num_categories"])
    return _forward_unfused(images, captions, prep["token_embed"], prep["wv"],
                            prep["wt"], prep["beta_proj"], prep["wfc"],
                            prep["fcb"], prep["num_categories"])


# ---------------------------------------------------------------------------
# Test harness
# ---------------------------------------------------------------------------

def make_params(key, *, in_dim, width, projection_dim, num_categories, vocab):
    ks = jax.random.split(key, 6)
    scale = 0.02
    return {
        "visual_proj": scale * jax.random.normal(ks[0], (in_dim, projection_dim), jnp.float32),
        "token_embed": scale * jax.random.normal(ks[1], (vocab, width), jnp.float32),
        "ln_gamma": 1.0 + 0.1 * jax.random.normal(ks[4], (width,), jnp.float32),
        "ln_beta": 0.05 * jax.random.normal(ks[5], (width,), jnp.float32),
        "text_proj": scale * jax.random.normal(ks[2], (width, projection_dim), jnp.float32),
        "fc_w": scale * jax.random.normal(ks[3], (num_categories, projection_dim), jnp.float32),
        "fc_b": jnp.zeros((num_categories,), jnp.float32),
    }


def reference(images, captions, params):
    B = images.shape[0]
    x_flat = images.reshape(B, -1)
    img_f = x_flat @ params["visual_proj"]
    t = params["token_embed"][captions[:, -1]]
    mu = t.mean(-1, keepdims=True)
    var = ((t - mu) ** 2).mean(-1, keepdims=True)
    t_n = (t - mu) * jax.lax.rsqrt(var + 1e-5) * params["ln_gamma"] + params["ln_beta"]
    txt_f = t_n @ params["text_proj"]
    return (img_f + txt_f) @ params["fc_w"].T + params["fc_b"]


if __name__ == "__main__":
    B, Cin, H, W_img = 2, 3, 16, 16
    seq = 8
    width = 32            # text transformer width (ln_final dim)
    projection_dim = 32
    vocab = 64

    key = jax.random.PRNGKey(0)
    k_img, k_cap, k_par = jax.random.split(key, 3)

    images = jax.random.normal(k_img, (B, Cin, H, W_img), jnp.float32)   # NCHW
    captions = jax.random.randint(k_cap, (B, seq), 0, vocab, jnp.int32)

    # Test 1: small class count -> fused-head path.
    # Test 2: large class count (c_pad > p_pad) -> two-stage path.
    for num_categories in (10, 300):
        params = make_params(k_par, in_dim=Cin * H * W_img, width=width,
                             projection_dim=projection_dim,
                             num_categories=num_categories, vocab=vocab)
        prep = prepare_params(params)

        out = clip_with_classifier(images, captions, prep)
        out = jax.block_until_ready(out)

        ref = reference(images, captions, params)
        assert out.shape == (B, num_categories)
        # bf16 MXU inputs (f32 accumulation) -> loose tolerance vs f32 ref.
        err = float(jnp.max(jnp.abs(out - ref)))
        assert jnp.allclose(out, ref, atol=2e-2, rtol=2e-2), err

    print("KERNEL_OK")
</pallas_src>

<mosaic_0001>
module attributes {stable_mosaic.version = 11 : i64} {
  func.func @clip_head_fused_kernel(%arg0: i32, %arg1: i32, %arg2: i32, %arg3: memref<8x1024xbf16, #tpu.memory_space<vmem>>, %arg4: memref<8x32xf32, #tpu.memory_space<vmem>>, %arg5: memref<1024x128xbf16, #tpu.memory_space<vmem>>, %arg6: memref<32x128xbf16, #tpu.memory_space<vmem>>, %arg7: memref<1x128xf32, #tpu.memory_space<vmem>>, %arg8: memref<8x128xf32, #tpu.memory_space<vmem>>) attributes {dimension_semantics = [#tpu.dimension_semantics<parallel>, #tpu.dimension_semantics<parallel>, #tpu.dimension_semantics<arbitrary>], iteration_bounds = array<i64: 1, 1, 1>, scalar_prefetch = 0 : i64, scratch_operands = 0 : i64, tpu.core_type = #tpu.core_type<tc>, window_params = [{transform_indices = @transform_0, window_bounds = array<i64: 8, 1024>}, {transform_indices = @transform_1, window_bounds = array<i64: 8, 32>}, {transform_indices = @transform_2, window_bounds = array<i64: 1024, 128>}, {transform_indices = @transform_3, window_bounds = array<i64: 32, 128>}, {transform_indices = @transform_4, window_bounds = array<i64: 1, 128>}, {transform_indices = @transform_5, window_bounds = array<i64: 8, 128>}]} {
    %c0_i32 = arith.constant 0 : i32
    %0 = arith.cmpi eq, %arg2, %c0_i32 : i32
    %1 = arith.extui %0 : i1 to i32
    %c0_i32_0 = arith.constant 0 : i32
    %2 = arith.cmpi ne, %1, %c0_i32_0 : i32
    scf.if %2 {
      %c0_8 = arith.constant 0 : index
      %c0_9 = arith.constant 0 : index
      %9 = vector.load %arg4[%c0_8, %c0_9] : memref<8x32xf32, #tpu.memory_space<vmem>>, vector<8x32xf32>
      %cst_10 = arith.constant dense<0.000000e+00> : vector<8xf32>
      %10 = vector.multi_reduction <add>, %9, %cst_10 [1] : vector<8x32xf32> to vector<8xf32>
      %11 = vector.shape_cast %10 : vector<8xf32> to vector<8x1xf32>
      %cst_11 = arith.constant 3.200000e+01 : f32
      %12 = vector.broadcast %cst_11 : f32 to vector<8x1xf32>
      %13 = arith.divf %11, %12 : vector<8x1xf32>
      %14 = vector.broadcast %13 : vector<8x1xf32> to vector<8x32xf32>
      %15 = arith.subf %9, %14 : vector<8x32xf32>
      %16 = arith.mulf %15, %15 : vector<8x32xf32>
      %cst_12 = arith.constant dense<0.000000e+00> : vector<8xf32>
      %17 = vector.multi_reduction <add>, %16, %cst_12 [1] : vector<8x32xf32> to vector<8xf32>
      %18 = vector.shape_cast %17 : vector<8xf32> to vector<8x1xf32>
      %cst_13 = arith.constant 3.200000e+01 : f32
      %19 = vector.broadcast %cst_13 : f32 to vector<8x1xf32>
      %20 = arith.divf %18, %19 : vector<8x1xf32>
      %21 = vector.broadcast %13 : vector<8x1xf32> to vector<8x32xf32>
      %22 = arith.subf %9, %21 : vector<8x32xf32>
      %cst_14 = arith.constant 9.99999974E-6 : f32
      %23 = vector.broadcast %cst_14 : f32 to vector<8x1xf32>
      %24 = arith.addf %20, %23 : vector<8x1xf32>
      %25 = math.rsqrt %24 : vector<8x1xf32>
      %26 = vector.broadcast %25 : vector<8x1xf32> to vector<8x32xf32>
      %27 = arith.mulf %22, %26 : vector<8x32xf32>
      %c0_15 = arith.constant 0 : index
      %c0_16 = arith.constant 0 : index
      %28 = vector.load %arg7[%c0_15, %c0_16] : memref<1x128xf32, #tpu.memory_space<vmem>>, vector<1x128xf32>
      %29 = arith.truncf %27 : vector<8x32xf32> to vector<8x32xbf16>
      %c0_17 = arith.constant 0 : index
      %c0_18 = arith.constant 0 : index
      %30 = vector.load %arg6[%c0_17, %c0_18] : memref<32x128xbf16, #tpu.memory_space<vmem>>, vector<32x128xbf16>
      %cst_19 = arith.constant dense<0.000000e+00> : vector<8x128xf32>
      %31 = tpu.matmul %29, %30, %cst_19 {dimension_numbers = #tpu.dot_dimension_numbers<[1], [0], [0], [1], [0, 0, 1, 1], [], []>} : vector<8x32xbf16>, vector<32x128xbf16>, vector<8x128xf32> -> vector<8x128xf32>
      %32 = vector.broadcast %28 : vector<1x128xf32> to vector<8x128xf32>
      %33 = arith.addf %32, %31 : vector<8x128xf32>
      %c0_20 = arith.constant 0 : index
      %c0_21 = arith.constant 0 : index
      %34 = vector.load %arg8[%c0_20, %c0_21] : memref<8x128xf32, #tpu.memory_space<vmem>>, vector<8x128xf32>
      tpu.vector_store %arg8[%c0_20, %c0_21], %33 {strides = array<i32>} : memref<8x128xf32, #tpu.memory_space<vmem>>, vector<8x128xf32>,
    } else {
    }
    %c0 = arith.constant 0 : index
    %c0_1 = arith.constant 0 : index
    %3 = vector.load %arg8[%c0, %c0_1] : memref<8x128xf32, #tpu.memory_space<vmem>>, vector<8x128xf32>
    %c0_2 = arith.constant 0 : index
    %c0_3 = arith.constant 0 : index
    %4 = vector.load %arg3[%c0_2, %c0_3] : memref<8x1024xbf16, #tpu.memory_space<vmem>>, vector<8x1024xbf16>
    %c0_4 = arith.constant 0 : index
    %c0_5 = arith.constant 0 : index
    %5 = vector.load %arg5[%c0_4, %c0_5] : memref<1024x128xbf16, #tpu.memory_space<vmem>>, vector<1024x128xbf16>
    %cst = arith.constant dense<0.000000e+00> : vector<8x128xf32>
    %6 = tpu.matmul %4, %5, %cst {dimension_numbers = #tpu.dot_dimension_numbers<[1], [0], [0], [1], [0, 0, 1, 1], [], []>} : vector<8x1024xbf16>, vector<1024x128xbf16>, vector<8x128xf32> -> vector<8x128xf32>
    %7 = arith.addf %3, %6 : vector<8x128xf32>
    %c0_6 = arith.constant 0 : index
    %c0_7 = arith.constant 0 : index
    %8 = vector.load %arg8[%c0_6, %c0_7] : memref<8x128xf32, #tpu.memory_space<vmem>>, vector<8x128xf32>
    tpu.vector_store %arg8[%c0_6, %c0_7], %7 {strides = array<i32>} : memref<8x128xf32, #tpu.memory_space<vmem>>, vector<8x128xf32>,
    return
  }
  func.func @transform_0(%arg0: i32, %arg1: i32, %arg2: i32) -> (i32, i32) {
    %c0_i32 = arith.constant 0 : i32
    return %arg0, %arg2 : i32, i32
  }
  func.func @transform_1(%arg0: i32, %arg1: i32, %arg2: i32) -> (i32, i32) {
    %c0_i32 = arith.constant 0 : i32
    %c0_i32_0 = arith.constant 0 : i32
    return %arg0, %c0_i32 : i32, i32
  }
  func.func @transform_2(%arg0: i32, %arg1: i32, %arg2: i32) -> (i32, i32) {
    %c0_i32 = arith.constant 0 : i32
    return %arg2, %arg1 : i32, i32
  }
  func.func @transform_3(%arg0: i32, %arg1: i32, %arg2: i32) -> (i32, i32) {
    %c0_i32 = arith.constant 0 : i32
    %c0_i32_0 = arith.constant 0 : i32
    return %c0_i32, %arg1 : i32, i32
  }
  func.func @transform_4(%arg0: i32, %arg1: i32, %arg2: i32) -> (i32, i32) {
    %c0_i32 = arith.constant 0 : i32
    %c0_i32_0 = arith.constant 0 : i32
    return %c0_i32, %arg1 : i32, i32
  }
  func.func @transform_5(%arg0: i32, %arg1: i32, %arg2: i32) -> (i32, i32) {
    %c0_i32 = arith.constant 0 : i32
    return %arg0, %arg1 : i32, i32
  }
}

</mosaic_0001>

<llo_original>
// kernel: _forward_fused.1
$region0: #{_forward_fused.1}
  #allocation0 [shape = 'u32[]', space=smem, size = 0x4, offset = 0x4, fixed_abs, tag = 'smem constant byte address 0x4 - core index']
  #allocation1 [shape = 'u32[72,128]{1,0:T(1,128)}', space=vmem, size = 0x9000, scoped, tag = 'internal scratch']
  %s0 = inlined_call_operand.vmem [shape: bf16[8,1024], index: 0, kind: input, shape index: {}]
  %s1 = inlined_call_operand.vmem [shape: f32[8,32], index: 1, kind: input, shape index: {}]
  %s2 = inlined_call_operand.hbm [shape: bf16[1024,128], index: 2, kind: input, shape index: {}]
  %s3 = inlined_call_operand.vmem [shape: bf16[32,128], index: 3, kind: input, shape index: {}]
  %s4 = inlined_call_operand.vmem [shape: f32[1,128], index: 4, kind: input, shape index: {}]
  %s5 = inlined_call_operand.vmem [shape: f32[8,128], index: 5, kind: output, shape index: {}]
  %s6 = sld [smem:[#allocation0]]
  $region38: #{_forward_fused.1} parent=0
    _
  %s8 = ssub.s32 1, %s6
  %s9 = scalar_select 0, %s8, %s6
  $region1: #{_forward_fused.1} parent=0
    #allocation2 [shape = 'u8[262144]{0}', space=vmem, size = 0x40000, scoped, tag = 'input window, operand 2, single buffered']
    #allocation3 [shape = 's32[1]{0}', space=sflag, size = 0x4, scoped, tag = 'scoped memory for _forward_fused.1']
    %10 = vsyncpa [#allocation3], 0
    // Predicated region
    $region2: #{_forward_fused.1} parent=1 // pred_check
      _
    $region3: #{_forward_fused.1} parent=1 // pred_check_branch
      %12 = sbr.rel (0) target = $region5
    $region4: #{_forward_fused.1} parent=1 // pred_region
      _
    $region5: #{_forward_fused.1} parent=1 // pred_fallthru
      _
    // Predicated region
    $region6: #{_forward_fused.1} parent=1 // pred_check
      _
    $region7: #{_forward_fused.1} parent=1 // pred_check_branch
      %14 = sbr.rel (0) target = $region9
    $region8: #{_forward_fused.1} parent=1 // pred_region
      _
    $region9: #{_forward_fused.1} parent=1 // pred_fallthru
      _
    // Predicated region
    $region10: #{_forward_fused.1} parent=1 // pred_check
      _
    $region11: #{_forward_fused.1} parent=1 // pred_check_branch
      %16 = sbr.rel (0) target = $region13
    $region12: #{_forward_fused.1} parent=1 // pred_region
      %18 = vsyncadd [#allocation3], 0
      %s19 = sshll.u32 %s2, 4
      %s20 = int_to_ptr.hbm [resolvable:$true] %s19
      %s21 = sshll.u32 [#allocation2], 4
      %s22 = int_to_ptr.vmem [resolvable:$true] %s21
      %27 = dma.hbm_to_vmem [thread:$0]  %s20, 8192, %s22, [#allocation3], 64, 64, 4
    $region13: #{_forward_fused.1} parent=1 // pred_fallthru
      _
    // Predicated region
    $region14: #{_forward_fused.1} parent=1 // pred_check
      _
    $region15: #{_forward_fused.1} parent=1 // pred_check_branch
      %29 = sbr.rel (0) target = $region17
    $region16: #{_forward_fused.1} parent=1 // pred_region
      _
    $region17: #{_forward_fused.1} parent=1 // pred_fallthru
      _
    // Predicated region
    $region18: #{_forward_fused.1} parent=1 // pred_check
      _
    $region19: #{_forward_fused.1} parent=1 // pred_check_branch
      %31 = sbr.rel (0) target = $region21
    $region20: #{_forward_fused.1} parent=1 // pred_region
      _
    $region21: #{_forward_fused.1} parent=1 // pred_fallthru
      _
    // Predicated region
    $region22: #{_forward_fused.1} parent=1 // pred_check
      _
    $region23: #{_forward_fused.1} parent=1 // pred_check_branch
      %33 = sbr.rel (0) target = $region25
    $region24: #{_forward_fused.1} parent=1 // pred_region
      %35 = dma.done [#allocation3], 8192
    $region25: #{_forward_fused.1} parent=1 // pred_fallthru
      _
    %p37 = scmp.eq.s32.totalorder 0, 0
    // Predicated region
    $region26: #{_forward_fused.1} parent=1 // pred_check
      %p38 = pneg %p37
    $region27: #{_forward_fused.1} parent=1 // pred_check_branch
      %40 = sbr.rel (%p38) target = $region29
    $region28: #{_forward_fused.1} parent=1 // pred_region
      %v41 = vld [vmem:[%s1] sm:$0xff]
      %vm42 = vcmask 261120
      %v43 = vsel %vm42, %v41, 0.0
      %44 = vadd.xlane.f32.xlu0 %v43
      %v45 = vpop.xlane.xlu0 %44
      %v46 = vrcp.pop 32.0
      %v47 = vmul.f32 32.0, %v46
      %v48 = vsub.f32 1.0, %v47
      %v49 = vmul.f32 %v46, %v48
      %v50 = vadd.f32 %v46, %v49
      %vm51 = vweird.f32 %v46
      %v52 = vsel %vm51, %v46, %v50
      %v53 = vmul.f32 %v45, %v52
      %v54 = vsub.f32 %v41, %v53
      %v55 = vmul.f32 %v54, %v54
      %v56 = vsel %vm42, %v55, 0.0
      %57 = vadd.xlane.f32.xlu0 %v56
      %v58 = vpop.xlane.xlu0 %57
      %v59 = vmul.f32 %v58, %v52
      %v60 = vadd.f32 %v59, 1e-05
      %v61 = vrsqrt.pop %v60
      %v62 = vmul.f32 %v61, %v60
      %v63 = vmul.f32 %v62, %v61
      %v64 = vmul.f32 0.5, %v63
      %v65 = vsub.f32 1.5, %v64
      %v66 = vmul.f32 %v61, %v65
      %vm67 = vweird.f32 %v60
      %vm68 = vweird.f32 %v61
      %vm69 = vmor %vm67, %vm68
      %v70 = vsel %vm69, %v61, %v66
      %v71 = vmul.f32 %v54, %v70
      %v72 = vld [vmem:[%s4] sm:$0x1]
      %v73 = vpack.c.bf16 %v71, %v71
      %v74 = vld [vmem:[%s3] sm:$0xf]
      %v75 = vld [vmem:[%s3 + $0x4] sm:$0xf]
      %v76 = vld [vmem:[%s3 + $0x8] sm:$0xf]
      %v77 = vld [vmem:[%s3 + $0xc] sm:$0xf]
      %v82 = vunpack.c.l.b16 %v74
      %v83 = vunpack.c.l.b16 %v75
      %v84 = vunpack.c.l.b16 %v76
      %v85 = vunpack.c.l.b16 %v77
      %v86 = vpack.c.b16 %v83, %v82
      %v87 = vpack.c.b16 %v85, %v84
      %v91 = vsel %vm42, %v73, 0
      %93 = vmatpush.bf16.msra.mxu0 0
      %94 = vmatpush.bf16.msra.mxu0 0
      %95 = vmatpush.bf16.msra.mxu0 0
      %96 = vmatpush.bf16.msra.mxu0 0
      %97 = vmatpush.bf16.msra.mxu0 0
      %98 = vmatpush.bf16.msra.mxu0 0
      %99 = vmatpush.bf16.msra.mxu0 %v87
      %100 = vmatpush.bf16.msra.mxu0 %v86
      %101 = vmatmul.bf16.gmra.mxu0 %v91
      %v102 = vpop.f32.mrf.mxu0
      %v103 = vadd.f32 0.0, %v102
      %v104 = vpop.f32.mrf.mxu0
      %105 = vdwg.mxu0
      %v107 = vperm.slane %v72, 0
      %v109 = vadd.f32 %v107, %v103
      %110 = vst [vmem:[%s5] sm:$0xff] %v109
    $region29: #{_forward_fused.1} parent=1 // pred_fallthru
      _
    %v111 = vld [vmem:[%s5] sm:$0xff]
    %v112 = vld [vmem:[%s0] sm:$0xff]
    %v113 = vld [vmem:[%s0 + $0x8] sm:$0xff]
    %v114 = vld [vmem:[%s0 + $0x10] sm:$0xff]
    %v115 = vld [vmem:[%s0 + $0x18] sm:$0xff]
    %v116 = vld [vmem:[#allocation2] sm:$0xf]
    %v117 = vld [vmem:[#allocation2 + $0x4] sm:$0xf]
    %v118 = vld [vmem:[#allocation2 + $0x8] sm:$0xf]
    %v119 = vld [vmem:[#allocation2 + $0xc] sm:$0xf]
    %v120 = vld [vmem:[#allocation2 + $0x10] sm:$0xf]
    %v121 = vld [vmem:[#allocation2 + $0x14] sm:$0xf]
    %v122 = vld [vmem:[#allocation2 + $0x18] sm:$0xf]
    %v123 = vld [vmem:[#allocation2 + $0x1c] sm:$0xf]
    %v124 = vld [vmem:[#allocation2 + $0x20] sm:$0xf]
    %v125 = vld [vmem:[#allocation2 + $0x24] sm:$0xf]
    %v126 = vld [vmem:[#allocation2 + $0x28] sm:$0xf]
    %v127 = vld [vmem:[#allocation2 + $0x2c] sm:$0xf]
    %v128 = vld [vmem:[#allocation2 + $0x30] sm:$0xf]
    %v129 = vld [vmem:[#allocation2 + $0x34] sm:$0xf]
    %v130 = vld [vmem:[#allocation2 + $0x38] sm:$0xf]
    %v131 = vld [vmem:[#allocation2 + $0x3c] sm:$0xf]
    %v132 = vld [vmem:[#allocation2 + $0x40] sm:$0xf]
    %v133 = vld [vmem:[#allocation2 + $0x44] sm:$0xf]
    %v134 = vld [vmem:[#allocation2 + $0x48] sm:$0xf]
    %v135 = vld [vmem:[#allocation2 + $0x4c] sm:$0xf]
    %v136 = vld [vmem:[#allocation2 + $0x50] sm:$0xf]
    %v137 = vld [vmem:[#allocation2 + $0x54] sm:$0xf]
    %v138 = vld [vmem:[#allocation2 + $0x58] sm:$0xf]
    %v139 = vld [vmem:[#allocation2 + $0x5c] sm:$0xf]
    %v140 = vld [vmem:[#allocation2 + $0x60] sm:$0xf]
    %v141 = vld [vmem:[#allocation2 + $0x64] sm:$0xf]
    %v142 = vld [vmem:[#allocation2 + $0x68] sm:$0xf]
    %v143 = vld [vmem:[#allocation2 + $0x6c] sm:$0xf]
    %v144 = vld [vmem:[#allocation2 + $0x70] sm:$0xf]
    %v145 = vld [vmem:[#allocation2 + $0x74] sm:$0xf]
    %v146 = vld [vmem:[#allocation2 + $0x78] sm:$0xf]
    %v147 = vld [vmem:[#allocation2 + $0x7c] sm:$0xf]
    %v148 = vld [vmem:[#allocation2 + $0x80] sm:$0xf]
    %v149 = vld [vmem:[#allocation2 + $0x84] sm:$0xf]
    %v150 = vld [vmem:[#allocation2 + $0x88] sm:$0xf]
    %v151 = vld [vmem:[#allocation2 + $0x8c] sm:$0xf]
    %v152 = vld [vmem:[#allocation2 + $0x90] sm:$0xf]
    %v153 = vld [vmem:[#allocation2 + $0x94] sm:$0xf]
    %v154 = vld [vmem:[#allocation2 + $0x98] sm:$0xf]
    %v155 = vld [vmem:[#allocation2 + $0x9c] sm:$0xf]
    %v156 = vld [vmem:[#allocation2 + $0xa0] sm:$0xf]
    %v157 = vld [vmem:[#allocation2 + $0xa4] sm:$0xf]
    %v158 = vld [vmem:[#allocation2 + $0xa8] sm:$0xf]
    %v159 = vld [vmem:[#allocation2 + $0xac] sm:$0xf]
    %v160 = vld [vmem:[#allocation2 + $0xb0] sm:$0xf]
    %v161 = vld [vmem:[#allocation2 + $0xb4] sm:$0xf]
    %v162 = vld [vmem:[#allocation2 + $0xb8] sm:$0xf]
    %v163 = vld [vmem:[#allocation2 + $0xbc] sm:$0xf]
    %v164 = vld [vmem:[#allocation2 + $0xc0] sm:$0xf]
    %v165 = vld [vmem:[#allocation2 + $0xc4] sm:$0xf]
    %v166 = vld [vmem:[#allocation2 + $0xc8] sm:$0xf]
    %v167 = vld [vmem:[#allocation2 + $0xcc] sm:$0xf]
    %v168 = vld [vmem:[#allocation2 + $0xd0] sm:$0xf]
    %v169 = vld [vmem:[#allocation2 + $0xd4] sm:$0xf]
    %v170 = vld [vmem:[#allocation2 + $0xd8] sm:$0xf]
    %v171 = vld [vmem:[#allocation2 + $0xdc] sm:$0xf]
    %v172 = vld [vmem:[#allocation2 + $0xe0] sm:$0xf]
    %v173 = vld [vmem:[#allocation2 + $0xe4] sm:$0xf]
    %v174 = vld [vmem:[#allocation2 + $0xe8] sm:$0xf]
    %v175 = vld [vmem:[#allocation2 + $0xec] sm:$0xf]
    %v176 = vld [vmem:[#allocation2 + $0xf0] sm:$0xf]
    %v177 = vld [vmem:[#allocation2 + $0xf4] sm:$0xf]
    %v178 = vld [vmem:[#allocation2 + $0xf8] sm:$0xf]
    %v179 = vld [vmem:[#allocation2 + $0xfc] sm:$0xf]
    %v180 = vld [vmem:[#allocation2 + $0x100] sm:$0xf]
    %v181 = vld [vmem:[#allocation2 + $0x104] sm:$0xf]
    %v182 = vld [vmem:[#allocation2 + $0x108] sm:$0xf]
    %v183 = vld [vmem:[#allocation2 + $0x10c] sm:$0xf]
    %v184 = vld [vmem:[#allocation2 + $0x110] sm:$0xf]
    %v185 = vld [vmem:[#allocation2 + $0x114] sm:$0xf]
    %v186 = vld [vmem:[#allocation2 + $0x118] sm:$0xf]
    %v187 = vld [vmem:[#allocation2 + $0x11c] sm:$0xf]
    %v188 = vld [vmem:[#allocation2 + $0x120] sm:$0xf]
    %v189 = vld [vmem:[#allocation2 + $0x124] sm:$0xf]
    %v190 = vld [vmem:[#allocation2 + $0x128] sm:$0xf]
    %v191 = vld [vmem:[#allocation2 + $0x12c] sm:$0xf]
    %v192 = vld [vmem:[#allocation2 + $0x130] sm:$0xf]
    %v193 = vld [vmem:[#allocation2 + $0x134] sm:$0xf]
    %v194 = vld [vmem:[#allocation2 + $0x138] sm:$0xf]
    %v195 = vld [vmem:[#allocation2 + $0x13c] sm:$0xf]
    %v196 = vld [vmem:[#allocation2 + $0x140] sm:$0xf]
    %v197 = vld [vmem:[#allocation2 + $0x144] sm:$0xf]
    %v198 = vld [vmem:[#allocation2 + $0x148] sm:$0xf]
    %v199 = vld [vmem:[#allocation2 + $0x14c] sm:$0xf]
    %v200 = vld [vmem:[#allocation2 + $0x150] sm:$0xf]
    %v201 = vld [vmem:[#allocation2 + $0x154] sm:$0xf]
    %v202 = vld [vmem:[#allocation2 + $0x158] sm:$0xf]
    %v203 = vld [vmem:[#allocation2 + $0x15c] sm:$0xf]
    %v204 = vld [vmem:[#allocation2 + $0x160] sm:$0xf]
    %v205 = vld [vmem:[#allocation2 + $0x164] sm:$0xf]
    %v206 = vld [vmem:[#allocation2 + $0x168] sm:$0xf]
    %v207 = vld [vmem:[#allocation2 + $0x16c] sm:$0xf]
    %v208 = vld [vmem:[#allocation2 + $0x170] sm:$0xf]
    %v209 = vld [vmem:[#allocation2 + $0x174] sm:$0xf]
    %v210 = vld [vmem:[#allocation2 + $0x178] sm:$0xf]
    %v211 = vld [vmem:[#allocation2 + $0x17c] sm:$0xf]
    %v212 = vld [vmem:[#allocation2 + $0x180] sm:$0xf]
    %v213 = vld [vmem:[#allocation2 + $0x184] sm:$0xf]
    %v214 = vld [vmem:[#allocation2 + $0x188] sm:$0xf]
    %v215 = vld [vmem:[#allocation2 + $0x18c] sm:$0xf]
    %v216 = vld [vmem:[#allocation2 + $0x190] sm:$0xf]
    %v217 = vld [vmem:[#allocation2 + $0x194] sm:$0xf]
    %v218 = vld [vmem:[#allocation2 + $0x198] sm:$0xf]
    %v219 = vld [vmem:[#allocation2 + $0x19c] sm:$0xf]
    %v220 = vld [vmem:[#allocation2 + $0x1a0] sm:$0xf]
    %v221 = vld [vmem:[#allocation2 + $0x1a4] sm:$0xf]
    %v222 = vld [vmem:[#allocation2 + $0x1a8] sm:$0xf]
    %v223 = vld [vmem:[#allocation2 + $0x1ac] sm:$0xf]
    %v224 = vld [vmem:[#allocation2 + $0x1b0] sm:$0xf]
    %v225 = vld [vmem:[#allocation2 + $0x1b4] sm:$0xf]
    %v226 = vld [vmem:[#allocation2 + $0x1b8] sm:$0xf]
    %v227 = vld [vmem:[#allocation2 + $0x1bc] sm:$0xf]
    %v228 = vld [vmem:[#allocation2 + $0x1c0] sm:$0xf]
    %v229 = vld [vmem:[#allocation2 + $0x1c4] sm:$0xf]
    %v230 = vld [vmem:[#allocation2 + $0x1c8] sm:$0xf]
    %v231 = vld [vmem:[#allocation2 + $0x1cc] sm:$0xf]
    %v232 = vld [vmem:[#allocation2 + $0x1d0] sm:$0xf]
    %v233 = vld [vmem:[#allocation2 + $0x1d4] sm:$0xf]
    %v234 = vld [vmem:[#allocation2 + $0x1d8] sm:$0xf]
    %v235 = vld [vmem:[#allocation2 + $0x1dc] sm:$0xf]
    %v236 = vld [vmem:[#allocation2 + $0x1e0] sm:$0xf]
    %v237 = vld [vmem:[#allocation2 + $0x1e4] sm:$0xf]
    %v238 = vld [vmem:[#allocation2 + $0x1e8] sm:$0xf]
    %v239 = vld [vmem:[#allocation2 + $0x1ec] sm:$0xf]
    %v240 = vld [vmem:[#allocation2 + $0x1f0] sm:$0xf]
    %v241 = vld [vmem:[#allocation2 + $0x1f4] sm:$0xf]
    %v242 = vld [vmem:[#allocation2 + $0x1f8] sm:$0xf]
    %v243 = vld [vmem:[#allocation2 + $0x1fc] sm:$0xf]
    %v248 = vunpack.c.l.b16 %v112
    %v249 = vunpack.c.h.b16 %v112
    %v250 = vunpack.c.l.b16 %v113
    %v251 = vunpack.c.h.b16 %v113
    %v252 = vunpack.c.l.b16 %v114
    %v253 = vunpack.c.h.b16 %v114
    %v254 = vunpack.c.l.b16 %v115
    %v255 = vunpack.c.h.b16 %v115
    %v256 = vpack.c.b16 %v248, %v248
    %v257 = vpack.c.b16 %v249, %v249
    %v258 = vpack.c.b16 %v250, %v250
    %v259 = vpack.c.b16 %v251, %v251
    %v260 = vpack.c.b16 %v252, %v252
    %v261 = vpack.c.b16 %v253, %v253
    %v262 = vpack.c.b16 %v254, %v254
    %v263 = vpack.c.b16 %v255, %v255
    %v400 = vunpack.c.l.b16 %v116
    %v401 = vunpack.c.l.b16 %v117
    %v402 = vunpack.c.l.b16 %v118
    %v403 = vunpack.c.l.b16 %v119
    %v404 = vunpack.c.l.b16 %v120
    %v405 = vunpack.c.l.b16 %v121
    %v406 = vunpack.c.l.b16 %v122
    %v407 = vunpack.c.l.b16 %v123
    %v408 = vunpack.c.l.b16 %v124
    %v409 = vunpack.c.l.b16 %v125
    %v410 = vunpack.c.l.b16 %v126
    %v411 = vunpack.c.l.b16 %v127
    %v412 = vunpack.c.l.b16 %v128
    %v413 = vunpack.c.l.b16 %v129
    %v414 = vunpack.c.l.b16 %v130
    %v415 = vunpack.c.l.b16 %v131
    %v416 = vunpack.c.l.b16 %v132
    %v417 = vunpack.c.l.b16 %v133
    %v418 = vunpack.c.l.b16 %v134
    %v419 = vunpack.c.l.b16 %v135
    %v420 = vunpack.c.l.b16 %v136
    %v421 = vunpack.c.l.b16 %v137
    %v422 = vunpack.c.l.b16 %v138
    %v423 = vunpack.c.l.b16 %v139
    %v424 = vunpack.c.l.b16 %v140
    %v425 = vunpack.c.l.b16 %v141
    %v426 = vunpack.c.l.b16 %v142
    %v427 = vunpack.c.l.b16 %v143
    %v428 = vunpack.c.l.b16 %v144
    %v429 = vunpack.c.l.b16 %v145
    %v430 = vunpack.c.l.b16 %v146
    %v431 = vunpack.c.l.b16 %v147
    %v432 = vunpack.c.l.b16 %v148
    %v433 = vunpack.c.l.b16 %v149
    %v434 = vunpack.c.l.b16 %v150
    %v435 = vunpack.c.l.b16 %v151
    %v436 = vunpack.c.l.b16 %v152
    %v437 = vunpack.c.l.b16 %v153
    %v438 = vunpack.c.l.b16 %v154
    %v439 = vunpack.c.l.b16 %v155
    %v440 = vunpack.c.l.b16 %v156
    %v441 = vunpack.c.l.b16 %v157
    %v442 = vunpack.c.l.b16 %v158
    %v443 = vunpack.c.l.b16 %v159
    %v444 = vunpack.c.l.b16 %v160
    %v445 = vunpack.c.l.b16 %v161
    %v446 = vunpack.c.l.b16 %v162
    %v447 = vunpack.c.l.b16 %v163
    %v448 = vunpack.c.l.b16 %v164
    %v449 = vunpack.c.l.b16 %v165
    %v450 = vunpack.c.l.b16 %v166
    %v451 = vunpack.c.l.b16 %v167
    %v452 = vunpack.c.l.b16 %v168
    %v453 = vunpack.c.l.b16 %v169
    %v454 = vunpack.c.l.b16 %v170
    %v455 = vunpack.c.l.b16 %v171
    %v456 = vunpack.c.l.b16 %v172
    %v457 = vunpack.c.l.b16 %v173
    %v458 = vunpack.c.l.b16 %v174
    %v459 = vunpack.c.l.b16 %v175
    %v460 = vunpack.c.l.b16 %v176
    %v461 = vunpack.c.l.b16 %v177
    %v462 = vunpack.c.l.b16 %v178
    %v463 = vunpack.c.l.b16 %v179
    %v464 = vunpack.c.l.b16 %v180
    %v465 = vunpack.c.l.b16 %v181
    %v466 = vunpack.c.l.b16 %v182
    %v467 = vunpack.c.l.b16 %v183
    %v468 = vunpack.c.l.b16 %v184
    %v469 = vunpack.c.l.b16 %v185
    %v470 = vunpack.c.l.b16 %v186
    %v471 = vunpack.c.l.b16 %v187
    %v472 = vunpack.c.l.b16 %v188
    %v473 = vunpack.c.l.b16 %v189
    %v474 = vunpack.c.l.b16 %v190
    %v475 = vunpack.c.l.b16 %v191
    %v476 = vunpack.c.l.b16 %v192
    %v477 = vunpack.c.l.b16 %v193
    %v478 = vunpack.c.l.b16 %v194
    %v479 = vunpack.c.l.b16 %v195
    %v480 = vunpack.c.l.b16 %v196
    %v481 = vunpack.c.l.b16 %v197
    %v482 = vunpack.c.l.b16 %v198
    %v483 = vunpack.c.l.b16 %v199
    %v484 = vunpack.c.l.b16 %v200
    %v485 = vunpack.c.l.b16 %v201
    %v486 = vunpack.c.l.b16 %v202
    %v487 = vunpack.c.l.b16 %v203
    %v488 = vunpack.c.l.b16 %v204
    %v489 = vunpack.c.l.b16 %v205
    %v490 = vunpack.c.l.b16 %v206
    %v491 = vunpack.c.l.b16 %v207
    %v492 = vunpack.c.l.b16 %v208
    %v493 = vunpack.c.l.b16 %v209
    %v494 = vunpack.c.l.b16 %v210
    %v495 = vunpack.c.l.b16 %v211
    %v496 = vunpack.c.l.b16 %v212
    %v497 = vunpack.c.l.b16 %v213
    %v498 = vunpack.c.l.b16 %v214
    %v499 = vunpack.c.l.b16 %v215
    %v500 = vunpack.c.l.b16 %v216
    %v501 = vunpack.c.l.b16 %v217
    %v502 = vunpack.c.l.b16 %v218
    %v503 = vunpack.c.l.b16 %v219
    %v504 = vunpack.c.l.b16 %v220
    %v505 = vunpack.c.l.b16 %v221
    %v506 = vunpack.c.l.b16 %v222
    %v507 = vunpack.c.l.b16 %v223
    %v508 = vunpack.c.l.b16 %v224
    %v509 = vunpack.c.l.b16 %v225
    %v510 = vunpack.c.l.b16 %v226
    %v511 = vunpack.c.l.b16 %v227
    %v512 = vunpack.c.l.b16 %v228
    %v513 = vunpack.c.l.b16 %v229
    %v514 = vunpack.c.l.b16 %v230
    %v515 = vunpack.c.l.b16 %v231
    %v516 = vunpack.c.l.b16 %v232
    %v517 = vunpack.c.l.b16 %v233
    %v518 = vunpack.c.l.b16 %v234
    %v519 = vunpack.c.l.b16 %v235
    %v520 = vunpack.c.l.b16 %v236
    %v521 = vunpack.c.l.b16 %v237
    %v522 = vunpack.c.l.b16 %v238
    %v523 = vunpack.c.l.b16 %v239
    %v524 = vunpack.c.l.b16 %v240
    %v525 = vunpack.c.l.b16 %v241
    %v526 = vunpack.c.l.b16 %v242
    %v527 = vunpack.c.l.b16 %v243
    %v528 = vpack.c.b16 %v401, %v400
    %v529 = vpack.c.b16 %v403, %v402
    %v530 = vpack.c.b16 %v405, %v404
    %v531 = vpack.c.b16 %v407, %v406
    %v532 = vpack.c.b16 %v409, %v408
    %v533 = vpack.c.b16 %v411, %v410
    %v534 = vpack.c.b16 %v413, %v412
    %v535 = vpack.c.b16 %v415, %v414
    %v536 = vpack.c.b16 %v417, %v416
    %v537 = vpack.c.b16 %v419, %v418
    %v538 = vpack.c.b16 %v421, %v420
    %v539 = vpack.c.b16 %v423, %v422
    %v540 = vpack.c.b16 %v425, %v424
    %v541 = vpack.c.b16 %v427, %v426
    %v542 = vpack.c.b16 %v429, %v428
    %v543 = vpack.c.b16 %v431, %v430
    %v544 = vpack.c.b16 %v433, %v432
    %v545 = vpack.c.b16 %v435, %v434
    %v546 = vpack.c.b16 %v437, %v436
    %v547 = vpack.c.b16 %v439, %v438
    %v548 = vpack.c.b16 %v441, %v440
    %v549 = vpack.c.b16 %v443, %v442
    %v550 = vpack.c.b16 %v445, %v444
    %v551 = vpack.c.b16 %v447, %v446
    %v552 = vpack.c.b16 %v449, %v448
    %v553 = vpack.c.b16 %v451, %v450
    %v554 = vpack.c.b16 %v453, %v452
    %v555 = vpack.c.b16 %v455, %v454
    %v556 = vpack.c.b16 %v457, %v456
    %v557 = vpack.c.b16 %v459, %v458
    %v558 = vpack.c.b16 %v461, %v460
    %v559 = vpack.c.b16 %v463, %v462
    %v560 = vpack.c.b16 %v465, %v464
    %v561 = vpack.c.b16 %v467, %v466
    %v562 = vpack.c.b16 %v469, %v468
    %v563 = vpack.c.b16 %v471, %v470
    %v564 = vpack.c.b16 %v473, %v472
    %v565 = vpack.c.b16 %v475, %v474
    %v566 = vpack.c.b16 %v477, %v476
    %v567 = vpack.c.b16 %v479, %v478
    %v568 = vpack.c.b16 %v481, %v480
    %v569 = vpack.c.b16 %v483, %v482
    %v570 = vpack.c.b16 %v485, %v484
    %v571 = vpack.c.b16 %v487, %v486
    %v572 = vpack.c.b16 %v489, %v488
    %v573 = vpack.c.b16 %v491, %v490
    %v574 = vpack.c.b16 %v493, %v492
    %v575 = vpack.c.b16 %v495, %v494
    %v576 = vpack.c.b16 %v497, %v496
    %v577 = vpack.c.b16 %v499, %v498
    %v578 = vpack.c.b16 %v501, %v500
    %v579 = vpack.c.b16 %v503, %v502
    %v580 = vpack.c.b16 %v505, %v504
    %v581 = vpack.c.b16 %v507, %v506
    %v582 = vpack.c.b16 %v509, %v508
    %v583 = vpack.c.b16 %v511, %v510
    %v584 = vpack.c.b16 %v513, %v512
    %v585 = vpack.c.b16 %v515, %v514
    %v586 = vpack.c.b16 %v517, %v516
    %v587 = vpack.c.b16 %v519, %v518
    %v588 = vpack.c.b16 %v521, %v520
    %v589 = vpack.c.b16 %v523, %v522
    %v590 = vpack.c.b16 %v525, %v524
    %v591 = vpack.c.b16 %v527, %v526
    %656 = vmatpush.bf16.msra.mxu0 %v535
    %657 = vmatpush.bf16.msra.mxu0 %v534
    %658 = vmatpush.bf16.msra.mxu0 %v533
    %659 = vmatpush.bf16.msra.mxu0 %v532
    %660 = vmatpush.bf16.msra.mxu0 %v531
    %661 = vmatpush.bf16.msra.mxu0 %v530
    %662 = vmatpush.bf16.msra.mxu0 %v529
    %663 = vmatpush.bf16.msra.mxu0 %v528
    %664 = vmatmul.bf16.gmra.mxu0 %v256
    %v665 = vpop.f32.mrf.mxu0
    %v666 = vadd.f32 0.0, %v665
    %v667 = vpop.f32.mrf.mxu0
    %668 = vdwg.mxu0
    %669 = vmatpush.bf16.msra.mxu0 %v543
    %670 = vmatpush.bf16.msra.mxu0 %v542
    %671 = vmatpush.bf16.msra.mxu0 %v541
    %672 = vmatpush.bf16.msra.mxu0 %v540
    %673 = vmatpush.bf16.msra.mxu0 %v539
    %674 = vmatpush.bf16.msra.mxu0 %v538
    %675 = vmatpush.bf16.msra.mxu0 %v537
    %676 = vmatpush.bf16.msra.mxu0 %v536
    %677 = vmatmul.bf16.gmra.mxu0 %v257
    %v678 = vpop.f32.mrf.mxu0
    %v679 = vadd.f32 %v666, %v678
    %v680 = vpop.f32.mrf.mxu0
    %681 = vdwg.mxu0
    %682 = vmatpush.bf16.msra.mxu0 %v551
    %683 = vmatpush.bf16.msra.mxu0 %v550
    %684 = vmatpush.bf16.msra.mxu0 %v549
    %685 = vmatpush.bf16.msra.mxu0 %v548
    %686 = vmatpush.bf16.msra.mxu0 %v547
    %687 = vmatpush.bf16.msra.mxu0 %v546
    %688 = vmatpush.bf16.msra.mxu0 %v545
    %689 = vmatpush.bf16.msra.mxu0 %v544
    %690 = vmatmul.bf16.gmra.mxu0 %v258
    %v691 = vpop.f32.mrf.mxu0
    %v692 = vadd.f32 %v679, %v691
    %v693 = vpop.f32.mrf.mxu0
    %694 = vdwg.mxu0
    %695 = vmatpush.bf16.msra.mxu0 %v559
    %696 = vmatpush.bf16.msra.mxu0 %v558
    %697 = vmatpush.bf16.msra.mxu0 %v557
    %698 = vmatpush.bf16.msra.mxu0 %v556
    %699 = vmatpush.bf16.msra.mxu0 %v555
    %700 = vmatpush.bf16.msra.mxu0 %v554
    %701 = vmatpush.bf16.msra.mxu0 %v553
    %702 = vmatpush.bf16.msra.mxu0 %v552
    %703 = vmatmul.bf16.gmra.mxu0 %v259
    %v704 = vpop.f32.mrf.mxu0
    %v705 = vadd.f32 %v692, %v704
    %v706 = vpop.f32.mrf.mxu0
    %707 = vdwg.mxu0
    %708 = vmatpush.bf16.msra.mxu0 %v567
    %709 = vmatpush.bf16.msra.mxu0 %v566
    %710 = vmatpush.bf16.msra.mxu0 %v565
    %711 = vmatpush.bf16.msra.mxu0 %v564
    %712 = vmatpush.bf16.msra.mxu0 %v563
    %713 = vmatpush.bf16.msra.mxu0 %v562
    %714 = vmatpush.bf16.msra.mxu0 %v561
    %715 = vmatpush.bf16.msra.mxu0 %v560
    %716 = vmatmul.bf16.gmra.mxu0 %v260
    %v717 = vpop.f32.mrf.mxu0
    %v718 = vadd.f32 %v705, %v717
    %v719 = vpop.f32.mrf.mxu0
    %720 = vdwg.mxu0
    %721 = vmatpush.bf16.msra.mxu0 %v575
    %722 = vmatpush.bf16.msra.mxu0 %v574
    %723 = vmatpush.bf16.msra.mxu0 %v573
    %724 = vmatpush.bf16.msra.mxu0 %v572
    %725 = vmatpush.bf16.msra.mxu0 %v571
    %726 = vmatpush.bf16.msra.mxu0 %v570
    %727 = vmatpush.bf16.msra.mxu0 %v569
    %728 = vmatpush.bf16.msra.mxu0 %v568
    %729 = vmatmul.bf16.gmra.mxu0 %v261
    %v730 = vpop.f32.mrf.mxu0
    %v731 = vadd.f32 %v718, %v730
    %v732 = vpop.f32.mrf.mxu0
    %733 = vdwg.mxu0
    %734 = vmatpush.bf16.msra.mxu0 %v583
    %735 = vmatpush.bf16.msra.mxu0 %v582
    %736 = vmatpush.bf16.msra.mxu0 %v581
    %737 = vmatpush.bf16.msra.mxu0 %v580
    %738 = vmatpush.bf16.msra.mxu0 %v579
    %739 = vmatpush.bf16.msra.mxu0 %v578
    %740 = vmatpush.bf16.msra.mxu0 %v577
    %741 = vmatpush.bf16.msra.mxu0 %v576
    %742 = vmatmul.bf16.gmra.mxu0 %v262
    %v743 = vpop.f32.mrf.mxu0
    %v744 = vadd.f32 %v731, %v743
    %v745 = vpop.f32.mrf.mxu0
    %746 = vdwg.mxu0
    %747 = vmatpush.bf16.msra.mxu0 %v591
    %748 = vmatpush.bf16.msra.mxu0 %v590
    %749 = vmatpush.bf16.msra.mxu0 %v589
    %750 = vmatpush.bf16.msra.mxu0 %v588
    %751 = vmatpush.bf16.msra.mxu0 %v587
    %752 = vmatpush.bf16.msra.mxu0 %v586
    %753 = vmatpush.bf16.msra.mxu0 %v585
    %754 = vmatpush.bf16.msra.mxu0 %v584
    %755 = vmatmul.bf16.gmra.mxu0 %v263
    %v756 = vpop.f32.mrf.mxu0
    %v757 = vadd.f32 %v744, %v756
    %v758 = vpop.f32.mrf.mxu0
    %759 = vdwg.mxu0
    %v760 = vadd.f32 %v111, %v757
    %761 = vst [vmem:[%s5] sm:$0xff] %v760
    // Predicated region
    $region30: #{_forward_fused.1} parent=1 // pred_check
      _
    $region31: #{_forward_fused.1} parent=1 // pred_check_branch
      %763 = sbr.rel (0) target = $region33
    $region32: #{_forward_fused.1} parent=1 // pred_region
      _
    $region33: #{_forward_fused.1} parent=1 // pred_fallthru
      _
    // Predicated region
    $region34: #{_forward_fused.1} parent=1 // pred_check
      _
    $region35: #{_forward_fused.1} parent=1 // pred_check_branch
      %765 = sbr.rel (0) target = $region37
    $region36: #{_forward_fused.1} parent=1 // pred_region
      _
    $region37: #{_forward_fused.1} parent=1 // pred_fallthru
      _
    %766 = vsyncpa [#allocation3], 1

</llo_original>
